<compile_context>
chip_gen: v7x
topology: tpu7x:2x2x1
jax: 0.10.0
libtpu: 0.0.40
codegen_flags: <defaults>
</compile_context>

<pallas_src>
import jax
import jax.numpy as jnp
from jax.experimental import pallas as pl
from jax.experimental.pallas import tpu as pltpu

# LIFSpike hyper-parameters (deterministic).
THRESH = 0.5
TAU = 0.5
GAMA = 1.0  # unused in forward (surrogate-gradient sharpness only)

# Tiling caps (f32): per-block x/spike slab <= TT*TILE_R*128*4 B <= 4 MiB,
# so 2 in-bufs + 2 out-bufs + mem scratch stays ~< 18 MiB on every TPU gen.
_MAX_TILE_R = 4096       # feature rows per tile (kept a multiple of 8)
_MAX_TT = 16             # timesteps batched (and unrolled) per grid step
_MAX_STEP_ROWS = 8192    # cap on TT * TILE_R  (-> 4 MiB f32 per block)
_VMEM_LIMIT_BYTES = 48 * 1024 * 1024


def _lif_kernel(x_ref, spike_ref, mem_ref):
    # x_ref / spike_ref: (TT, TILE_R, 128); mem_ref scratch: (TILE_R, 128).
    @pl.when(pl.program_id(1) == 0)      # start of the time axis -> re_init()
    def _():
        mem_ref[...] = jnp.zeros_like(mem_ref)

    tt = x_ref.shape[0]
    for i in range(tt):                  # small, statically unrolled
        # mem = mem * tau + x
        mem = mem_ref[...] * TAU + x_ref[i]
        # spike = (mem - thresh > 0)  ==  mem > thresh   (exact for finite f32)
        spiked = mem > THRESH
        spike_ref[i] = spiked.astype(spike_ref.dtype)
        # hard reset: mem * (1 - spike)  ==  where(spike, 0, mem)
        mem_ref[...] = jnp.where(spiked, 0.0, mem)


def _pick_tile_r(R):
    """Largest feature-tile (rows of 128 lanes) respecting (8,128) tiling."""
    if R <= _MAX_TILE_R:
        return R                          # full-dim block is always legal
    start = _MAX_TILE_R - (_MAX_TILE_R % 8)
    for d in range(start, 0, -8):         # multiple of 8 that divides R
        if R % d == 0:
            return d
    return R                              # fallback: untiled (still correct)


def _pick_tt(T, tile_r):
    """Largest divisor of T within the per-block byte budget."""
    cap = min(_MAX_TT, max(1, _MAX_STEP_ROWS // max(tile_r, 1)))
    for d in range(min(T, cap), 0, -1):
        if T % d == 0:
            return d
    return 1


def recurrent_lif(x_seq):
    """x_seq: [T, B, C, H, W] float32 -> spikes [T, B, C, H, W] float32."""
    T, B, C, H, W = x_seq.shape
    feat = B * C * H * W
    assert feat % 128 == 0, "flattened feature size must be a multiple of 128"
    R = feat // 128

    tile_r = _pick_tile_r(R)
    tt = _pick_tt(T, tile_r)
    grid = (R // tile_r, T // tt)         # feature tiles outer, time inner

    x_flat = x_seq.reshape(T, R, 128)
    itemsize = jnp.dtype(x_seq.dtype).itemsize

    spikes_flat = pl.pallas_call(
        _lif_kernel,
        out_shape=jax.ShapeDtypeStruct((T, R, 128), x_seq.dtype),
        grid_spec=pltpu.PrefetchScalarGridSpec(
            num_scalar_prefetch=0,
            grid=grid,
            in_specs=[pl.BlockSpec((tt, tile_r, 128), lambda r, t: (t, r, 0))],
            out_specs=pl.BlockSpec((tt, tile_r, 128), lambda r, t: (t, r, 0)),
            scratch_shapes=[pltpu.VMEM((tile_r, 128), jnp.float32)],
        ),
        compiler_params=pltpu.CompilerParams(
            # feature tiles are independent (megacore-parallel on v7x);
            # the time axis carries mem -> sequential and innermost.
            dimension_semantics=("parallel", "arbitrary"),
            vmem_limit_bytes=_VMEM_LIMIT_BYTES,
        ),
        cost_estimate=pl.CostEstimate(
            flops=5 * T * feat,
            transcendentals=0,
            bytes_accessed=2 * T * feat * itemsize,
        ),
    )(x_flat)

    return spikes_flat.reshape(T, B, C, H, W)


def _reference_lif(x_seq):
    """Pure-JAX reference: PyTorch forward applied over T steps after re_init()."""
    def step(mem, x):
        mem = mem * TAU + x
        spike = ((mem - THRESH) > 0).astype(x.dtype)
        mem = mem * (1.0 - spike)
        return mem, spike

    mem0 = jnp.zeros_like(x_seq[0])
    _, spikes = jax.lax.scan(step, mem0, x_seq)
    return spikes


if __name__ == "__main__":
    T, B, C, H, W = 8, 2, 4, 16, 16
    key = jax.random.PRNGKey(0)
    x_seq = jax.random.normal(key, (T, B, C, H, W), dtype=jnp.float32)

    spikes = recurrent_lif(x_seq)
    jax.block_until_ready(spikes)

    ref = _reference_lif(x_seq)
    assert spikes.shape == (T, B, C, H, W)
    assert spikes.dtype == jnp.float32
    assert jnp.array_equal(spikes, ref), "Pallas output mismatch vs reference"

    print("KERNEL_OK")
</pallas_src>

<mosaic_0001>
module attributes {stable_mosaic.version = 11 : i64} {
  func.func @_lif_kernel(%arg0: i32, %arg1: i32, %arg2: memref<8x16x128xf32, #tpu.memory_space<vmem>>, %arg3: memref<8x16x128xf32, #tpu.memory_space<vmem>>, %arg4: memref<16x128xf32, #tpu.memory_space<vmem>>) attributes {dimension_semantics = [#tpu.dimension_semantics<parallel>, #tpu.dimension_semantics<arbitrary>], iteration_bounds = array<i64: 1, 1>, scalar_prefetch = 0 : i64, scratch_operands = 1 : i64, tpu.core_type = #tpu.core_type<tc>, window_params = [{transform_indices = @transform_0, window_bounds = array<i64: 8, 16, 128>}, {transform_indices = @transform_1, window_bounds = array<i64: 8, 16, 128>}]} {
    %c0_i32 = arith.constant 0 : i32
    %0 = arith.cmpi eq, %arg1, %c0_i32 : i32
    %1 = arith.extui %0 : i1 to i32
    %c0_i32_0 = arith.constant 0 : i32
    %2 = arith.cmpi ne, %1, %c0_i32_0 : i32
    scf.if %2 {
      %cst_96 = arith.constant 0.000000e+00 : f32
      %131 = vector.broadcast %cst_96 : f32 to vector<16x128xf32>
      %c0_97 = arith.constant 0 : index
      %c0_98 = arith.constant 0 : index
      %132 = vector.load %arg4[%c0_97, %c0_98] : memref<16x128xf32, #tpu.memory_space<vmem>>, vector<16x128xf32>
      tpu.vector_store %arg4[%c0_97, %c0_98], %131 {strides = array<i32>} : memref<16x128xf32, #tpu.memory_space<vmem>>, vector<16x128xf32>,
    } else {
    }
    %c0 = arith.constant 0 : index
    %c0_1 = arith.constant 0 : index
    %3 = vector.load %arg4[%c0, %c0_1] : memref<16x128xf32, #tpu.memory_space<vmem>>, vector<16x128xf32>
    %cst = arith.constant 5.000000e-01 : f32
    %4 = vector.broadcast %cst : f32 to vector<16x128xf32>
    %5 = arith.mulf %3, %4 : vector<16x128xf32>
    %c0_2 = arith.constant 0 : index
    %c0_3 = arith.constant 0 : index
    %c0_4 = arith.constant 0 : index
    %6 = vector.load %arg2[%c0_2, %c0_3, %c0_4] : memref<8x16x128xf32, #tpu.memory_space<vmem>>, vector<1x16x128xf32>
    %7 = vector.shape_cast %6 : vector<1x16x128xf32> to vector<16x128xf32>
    %8 = arith.addf %5, %7 : vector<16x128xf32>
    %cst_5 = arith.constant 5.000000e-01 : f32
    %9 = vector.broadcast %cst_5 : f32 to vector<16x128xf32>
    %10 = arith.cmpf ogt, %8, %9 : vector<16x128xf32>
    %11 = arith.extui %10 : vector<16x128xi1> to vector<16x128xi32>
    %12 = arith.sitofp %11 : vector<16x128xi32> to vector<16x128xf32>
    %c0_6 = arith.constant 0 : index
    %c0_7 = arith.constant 0 : index
    %c0_8 = arith.constant 0 : index
    %13 = vector.load %arg3[%c0_6, %c0_7, %c0_8] : memref<8x16x128xf32, #tpu.memory_space<vmem>>, vector<1x16x128xf32>
    %14 = vector.shape_cast %13 : vector<1x16x128xf32> to vector<16x128xf32>
    %15 = vector.shape_cast %12 : vector<16x128xf32> to vector<1x16x128xf32>
    tpu.vector_store %arg3[%c0_6, %c0_7, %c0_8], %15 {strides = array<i32>} : memref<8x16x128xf32, #tpu.memory_space<vmem>>, vector<1x16x128xf32>,
    %cst_9 = arith.constant 0.000000e+00 : f32
    %16 = vector.broadcast %cst_9 : f32 to vector<16x128xf32>
    %17 = arith.select %10, %16, %8 : vector<16x128xi1>, vector<16x128xf32>
    %c0_10 = arith.constant 0 : index
    %c0_11 = arith.constant 0 : index
    %18 = vector.load %arg4[%c0_10, %c0_11] : memref<16x128xf32, #tpu.memory_space<vmem>>, vector<16x128xf32>
    tpu.vector_store %arg4[%c0_10, %c0_11], %17 {strides = array<i32>} : memref<16x128xf32, #tpu.memory_space<vmem>>, vector<16x128xf32>,
    %c0_12 = arith.constant 0 : index
    %c0_13 = arith.constant 0 : index
    %19 = vector.load %arg4[%c0_12, %c0_13] : memref<16x128xf32, #tpu.memory_space<vmem>>, vector<16x128xf32>
    %cst_14 = arith.constant 5.000000e-01 : f32
    %20 = vector.broadcast %cst_14 : f32 to vector<16x128xf32>
    %21 = arith.mulf %19, %20 : vector<16x128xf32>
    %c1 = arith.constant 1 : index
    %c0_15 = arith.constant 0 : index
    %c0_16 = arith.constant 0 : index
    %22 = vector.load %arg2[%c1, %c0_15, %c0_16] : memref<8x16x128xf32, #tpu.memory_space<vmem>>, vector<1x16x128xf32>
    %23 = vector.shape_cast %22 : vector<1x16x128xf32> to vector<16x128xf32>
    %24 = arith.addf %21, %23 : vector<16x128xf32>
    %cst_17 = arith.constant 5.000000e-01 : f32
    %25 = vector.broadcast %cst_17 : f32 to vector<16x128xf32>
    %26 = arith.cmpf ogt, %24, %25 : vector<16x128xf32>
    %27 = arith.extui %26 : vector<16x128xi1> to vector<16x128xi32>
    %28 = arith.sitofp %27 : vector<16x128xi32> to vector<16x128xf32>
    %c1_18 = arith.constant 1 : index
    %c0_19 = arith.constant 0 : index
    %c0_20 = arith.constant 0 : index
    %29 = vector.load %arg3[%c1_18, %c0_19, %c0_20] : memref<8x16x128xf32, #tpu.memory_space<vmem>>, vector<1x16x128xf32>
    %30 = vector.shape_cast %29 : vector<1x16x128xf32> to vector<16x128xf32>
    %31 = vector.shape_cast %28 : vector<16x128xf32> to vector<1x16x128xf32>
    tpu.vector_store %arg3[%c1_18, %c0_19, %c0_20], %31 {strides = array<i32>} : memref<8x16x128xf32, #tpu.memory_space<vmem>>, vector<1x16x128xf32>,
    %cst_21 = arith.constant 0.000000e+00 : f32
    %32 = vector.broadcast %cst_21 : f32 to vector<16x128xf32>
    %33 = arith.select %26, %32, %24 : vector<16x128xi1>, vector<16x128xf32>
    %c0_22 = arith.constant 0 : index
    %c0_23 = arith.constant 0 : index
    %34 = vector.load %arg4[%c0_22, %c0_23] : memref<16x128xf32, #tpu.memory_space<vmem>>, vector<16x128xf32>
    tpu.vector_store %arg4[%c0_22, %c0_23], %33 {strides = array<i32>} : memref<16x128xf32, #tpu.memory_space<vmem>>, vector<16x128xf32>,
    %c0_24 = arith.constant 0 : index
    %c0_25 = arith.constant 0 : index
    %35 = vector.load %arg4[%c0_24, %c0_25] : memref<16x128xf32, #tpu.memory_space<vmem>>, vector<16x128xf32>
    %cst_26 = arith.constant 5.000000e-01 : f32
    %36 = vector.broadcast %cst_26 : f32 to vector<16x128xf32>
    %37 = arith.mulf %35, %36 : vector<16x128xf32>
    %c2 = arith.constant 2 : index
    %c0_27 = arith.constant 0 : index
    %c0_28 = arith.constant 0 : index
    %38 = vector.load %arg2[%c2, %c0_27, %c0_28] : memref<8x16x128xf32, #tpu.memory_space<vmem>>, vector<1x16x128xf32>
    %39 = vector.shape_cast %38 : vector<1x16x128xf32> to vector<16x128xf32>
    %40 = arith.addf %37, %39 : vector<16x128xf32>
    %cst_29 = arith.constant 5.000000e-01 : f32
    %41 = vector.broadcast %cst_29 : f32 to vector<16x128xf32>
    %42 = arith.cmpf ogt, %40, %41 : vector<16x128xf32>
    %43 = arith.extui %42 : vector<16x128xi1> to vector<16x128xi32>
    %44 = arith.sitofp %43 : vector<16x128xi32> to vector<16x128xf32>
    %c2_30 = arith.constant 2 : index
    %c0_31 = arith.constant 0 : index
    %c0_32 = arith.constant 0 : index
    %45 = vector.load %arg3[%c2_30, %c0_31, %c0_32] : memref<8x16x128xf32, #tpu.memory_space<vmem>>, vector<1x16x128xf32>
    %46 = vector.shape_cast %45 : vector<1x16x128xf32> to vector<16x128xf32>
    %47 = vector.shape_cast %44 : vector<16x128xf32> to vector<1x16x128xf32>
    tpu.vector_store %arg3[%c2_30, %c0_31, %c0_32], %47 {strides = array<i32>} : memref<8x16x128xf32, #tpu.memory_space<vmem>>, vector<1x16x128xf32>,
    %cst_33 = arith.constant 0.000000e+00 : f32
    %48 = vector.broadcast %cst_33 : f32 to vector<16x128xf32>
    %49 = arith.select %42, %48, %40 : vector<16x128xi1>, vector<16x128xf32>
    %c0_34 = arith.constant 0 : index
    %c0_35 = arith.constant 0 : index
    %50 = vector.load %arg4[%c0_34, %c0_35] : memref<16x128xf32, #tpu.memory_space<vmem>>, vector<16x128xf32>
    tpu.vector_store %arg4[%c0_34, %c0_35], %49 {strides = array<i32>} : memref<16x128xf32, #tpu.memory_space<vmem>>, vector<16x128xf32>,
    %c0_36 = arith.constant 0 : index
    %c0_37 = arith.constant 0 : index
    %51 = vector.load %arg4[%c0_36, %c0_37] : memref<16x128xf32, #tpu.memory_space<vmem>>, vector<16x128xf32>
    %cst_38 = arith.constant 5.000000e-01 : f32
    %52 = vector.broadcast %cst_38 : f32 to vector<16x128xf32>
    %53 = arith.mulf %51, %52 : vector<16x128xf32>
    %c3 = arith.constant 3 : index
    %c0_39 = arith.constant 0 : index
    %c0_40 = arith.constant 0 : index
    %54 = vector.load %arg2[%c3, %c0_39, %c0_40] : memref<8x16x128xf32, #tpu.memory_space<vmem>>, vector<1x16x128xf32>
    %55 = vector.shape_cast %54 : vector<1x16x128xf32> to vector<16x128xf32>
    %56 = arith.addf %53, %55 : vector<16x128xf32>
    %cst_41 = arith.constant 5.000000e-01 : f32
    %57 = vector.broadcast %cst_41 : f32 to vector<16x128xf32>
    %58 = arith.cmpf ogt, %56, %57 : vector<16x128xf32>
    %59 = arith.extui %58 : vector<16x128xi1> to vector<16x128xi32>
    %60 = arith.sitofp %59 : vector<16x128xi32> to vector<16x128xf32>
    %c3_42 = arith.constant 3 : index
    %c0_43 = arith.constant 0 : index
    %c0_44 = arith.constant 0 : index
    %61 = vector.load %arg3[%c3_42, %c0_43, %c0_44] : memref<8x16x128xf32, #tpu.memory_space<vmem>>, vector<1x16x128xf32>
    %62 = vector.shape_cast %61 : vector<1x16x128xf32> to vector<16x128xf32>
    %63 = vector.shape_cast %60 : vector<16x128xf32> to vector<1x16x128xf32>
    tpu.vector_store %arg3[%c3_42, %c0_43, %c0_44], %63 {strides = array<i32>} : memref<8x16x128xf32, #tpu.memory_space<vmem>>, vector<1x16x128xf32>,
    %cst_45 = arith.constant 0.000000e+00 : f32
    %64 = vector.broadcast %cst_45 : f32 to vector<16x128xf32>
    %65 = arith.select %58, %64, %56 : vector<16x128xi1>, vector<16x128xf32>
    %c0_46 = arith.constant 0 : index
    %c0_47 = arith.constant 0 : index
    %66 = vector.load %arg4[%c0_46, %c0_47] : memref<16x128xf32, #tpu.memory_space<vmem>>, vector<16x128xf32>
    tpu.vector_store %arg4[%c0_46, %c0_47], %65 {strides = array<i32>} : memref<16x128xf32, #tpu.memory_space<vmem>>, vector<16x128xf32>,
    %c0_48 = arith.constant 0 : index
    %c0_49 = arith.constant 0 : index
    %67 = vector.load %arg4[%c0_48, %c0_49] : memref<16x128xf32, #tpu.memory_space<vmem>>, vector<16x128xf32>
    %cst_50 = arith.constant 5.000000e-01 : f32
    %68 = vector.broadcast %cst_50 : f32 to vector<16x128xf32>
    %69 = arith.mulf %67, %68 : vector<16x128xf32>
    %c4 = arith.constant 4 : index
    %c0_51 = arith.constant 0 : index
    %c0_52 = arith.constant 0 : index
    %70 = vector.load %arg2[%c4, %c0_51, %c0_52] : memref<8x16x128xf32, #tpu.memory_space<vmem>>, vector<1x16x128xf32>
    %71 = vector.shape_cast %70 : vector<1x16x128xf32> to vector<16x128xf32>
    %72 = arith.addf %69, %71 : vector<16x128xf32>
    %cst_53 = arith.constant 5.000000e-01 : f32
    %73 = vector.broadcast %cst_53 : f32 to vector<16x128xf32>
    %74 = arith.cmpf ogt, %72, %73 : vector<16x128xf32>
    %75 = arith.extui %74 : vector<16x128xi1> to vector<16x128xi32>
    %76 = arith.sitofp %75 : vector<16x128xi32> to vector<16x128xf32>
    %c4_54 = arith.constant 4 : index
    %c0_55 = arith.constant 0 : index
    %c0_56 = arith.constant 0 : index
    %77 = vector.load %arg3[%c4_54, %c0_55, %c0_56] : memref<8x16x128xf32, #tpu.memory_space<vmem>>, vector<1x16x128xf32>
    %78 = vector.shape_cast %77 : vector<1x16x128xf32> to vector<16x128xf32>
    %79 = vector.shape_cast %76 : vector<16x128xf32> to vector<1x16x128xf32>
    tpu.vector_store %arg3[%c4_54, %c0_55, %c0_56], %79 {strides = array<i32>} : memref<8x16x128xf32, #tpu.memory_space<vmem>>, vector<1x16x128xf32>,
    %cst_57 = arith.constant 0.000000e+00 : f32
    %80 = vector.broadcast %cst_57 : f32 to vector<16x128xf32>
    %81 = arith.select %74, %80, %72 : vector<16x128xi1>, vector<16x128xf32>
    %c0_58 = arith.constant 0 : index
    %c0_59 = arith.constant 0 : index
    %82 = vector.load %arg4[%c0_58, %c0_59] : memref<16x128xf32, #tpu.memory_space<vmem>>, vector<16x128xf32>
    tpu.vector_store %arg4[%c0_58, %c0_59], %81 {strides = array<i32>} : memref<16x128xf32, #tpu.memory_space<vmem>>, vector<16x128xf32>,
    %c0_60 = arith.constant 0 : index
    %c0_61 = arith.constant 0 : index
    %83 = vector.load %arg4[%c0_60, %c0_61] : memref<16x128xf32, #tpu.memory_space<vmem>>, vector<16x128xf32>
    %cst_62 = arith.constant 5.000000e-01 : f32
    %84 = vector.broadcast %cst_62 : f32 to vector<16x128xf32>
    %85 = arith.mulf %83, %84 : vector<16x128xf32>
    %c5 = arith.constant 5 : index
    %c0_63 = arith.constant 0 : index
    %c0_64 = arith.constant 0 : index
    %86 = vector.load %arg2[%c5, %c0_63, %c0_64] : memref<8x16x128xf32, #tpu.memory_space<vmem>>, vector<1x16x128xf32>
    %87 = vector.shape_cast %86 : vector<1x16x128xf32> to vector<16x128xf32>
    %88 = arith.addf %85, %87 : vector<16x128xf32>
    %cst_65 = arith.constant 5.000000e-01 : f32
    %89 = vector.broadcast %cst_65 : f32 to vector<16x128xf32>
    %90 = arith.cmpf ogt, %88, %89 : vector<16x128xf32>
    %91 = arith.extui %90 : vector<16x128xi1> to vector<16x128xi32>
    %92 = arith.sitofp %91 : vector<16x128xi32> to vector<16x128xf32>
    %c5_66 = arith.constant 5 : index
    %c0_67 = arith.constant 0 : index
    %c0_68 = arith.constant 0 : index
    %93 = vector.load %arg3[%c5_66, %c0_67, %c0_68] : memref<8x16x128xf32, #tpu.memory_space<vmem>>, vector<1x16x128xf32>
    %94 = vector.shape_cast %93 : vector<1x16x128xf32> to vector<16x128xf32>
    %95 = vector.shape_cast %92 : vector<16x128xf32> to vector<1x16x128xf32>
    tpu.vector_store %arg3[%c5_66, %c0_67, %c0_68], %95 {strides = array<i32>} : memref<8x16x128xf32, #tpu.memory_space<vmem>>, vector<1x16x128xf32>,
    %cst_69 = arith.constant 0.000000e+00 : f32
    %96 = vector.broadcast %cst_69 : f32 to vector<16x128xf32>
    %97 = arith.select %90, %96, %88 : vector<16x128xi1>, vector<16x128xf32>
    %c0_70 = arith.constant 0 : index
    %c0_71 = arith.constant 0 : index
    %98 = vector.load %arg4[%c0_70, %c0_71] : memref<16x128xf32, #tpu.memory_space<vmem>>, vector<16x128xf32>
    tpu.vector_store %arg4[%c0_70, %c0_71], %97 {strides = array<i32>} : memref<16x128xf32, #tpu.memory_space<vmem>>, vector<16x128xf32>,
    %c0_72 = arith.constant 0 : index
    %c0_73 = arith.constant 0 : index
    %99 = vector.load %arg4[%c0_72, %c0_73] : memref<16x128xf32, #tpu.memory_space<vmem>>, vector<16x128xf32>
    %cst_74 = arith.constant 5.000000e-01 : f32
    %100 = vector.broadcast %cst_74 : f32 to vector<16x128xf32>
    %101 = arith.mulf %99, %100 : vector<16x128xf32>
    %c6 = arith.constant 6 : index
    %c0_75 = arith.constant 0 : index
    %c0_76 = arith.constant 0 : index
    %102 = vector.load %arg2[%c6, %c0_75, %c0_76] : memref<8x16x128xf32, #tpu.memory_space<vmem>>, vector<1x16x128xf32>
    %103 = vector.shape_cast %102 : vector<1x16x128xf32> to vector<16x128xf32>
    %104 = arith.addf %101, %103 : vector<16x128xf32>
    %cst_77 = arith.constant 5.000000e-01 : f32
    %105 = vector.broadcast %cst_77 : f32 to vector<16x128xf32>
    %106 = arith.cmpf ogt, %104, %105 : vector<16x128xf32>
    %107 = arith.extui %106 : vector<16x128xi1> to vector<16x128xi32>
    %108 = arith.sitofp %107 : vector<16x128xi32> to vector<16x128xf32>
    %c6_78 = arith.constant 6 : index
    %c0_79 = arith.constant 0 : index
    %c0_80 = arith.constant 0 : index
    %109 = vector.load %arg3[%c6_78, %c0_79, %c0_80] : memref<8x16x128xf32, #tpu.memory_space<vmem>>, vector<1x16x128xf32>
    %110 = vector.shape_cast %109 : vector<1x16x128xf32> to vector<16x128xf32>
    %111 = vector.shape_cast %108 : vector<16x128xf32> to vector<1x16x128xf32>
    tpu.vector_store %arg3[%c6_78, %c0_79, %c0_80], %111 {strides = array<i32>} : memref<8x16x128xf32, #tpu.memory_space<vmem>>, vector<1x16x128xf32>,
    %cst_81 = arith.constant 0.000000e+00 : f32
    %112 = vector.broadcast %cst_81 : f32 to vector<16x128xf32>
    %113 = arith.select %106, %112, %104 : vector<16x128xi1>, vector<16x128xf32>
    %c0_82 = arith.constant 0 : index
    %c0_83 = arith.constant 0 : index
    %114 = vector.load %arg4[%c0_82, %c0_83] : memref<16x128xf32, #tpu.memory_space<vmem>>, vector<16x128xf32>
    tpu.vector_store %arg4[%c0_82, %c0_83], %113 {strides = array<i32>} : memref<16x128xf32, #tpu.memory_space<vmem>>, vector<16x128xf32>,
    %c0_84 = arith.constant 0 : index
    %c0_85 = arith.constant 0 : index
    %115 = vector.load %arg4[%c0_84, %c0_85] : memref<16x128xf32, #tpu.memory_space<vmem>>, vector<16x128xf32>
    %cst_86 = arith.constant 5.000000e-01 : f32
    %116 = vector.broadcast %cst_86 : f32 to vector<16x128xf32>
    %117 = arith.mulf %115, %116 : vector<16x128xf32>
    %c7 = arith.constant 7 : index
    %c0_87 = arith.constant 0 : index
    %c0_88 = arith.constant 0 : index
    %118 = vector.load %arg2[%c7, %c0_87, %c0_88] : memref<8x16x128xf32, #tpu.memory_space<vmem>>, vector<1x16x128xf32>
    %119 = vector.shape_cast %118 : vector<1x16x128xf32> to vector<16x128xf32>
    %120 = arith.addf %117, %119 : vector<16x128xf32>
    %cst_89 = arith.constant 5.000000e-01 : f32
    %121 = vector.broadcast %cst_89 : f32 to vector<16x128xf32>
    %122 = arith.cmpf ogt, %120, %121 : vector<16x128xf32>
    %123 = arith.extui %122 : vector<16x128xi1> to vector<16x128xi32>
    %124 = arith.sitofp %123 : vector<16x128xi32> to vector<16x128xf32>
    %c7_90 = arith.constant 7 : index
    %c0_91 = arith.constant 0 : index
    %c0_92 = arith.constant 0 : index
    %125 = vector.load %arg3[%c7_90, %c0_91, %c0_92] : memref<8x16x128xf32, #tpu.memory_space<vmem>>, vector<1x16x128xf32>
    %126 = vector.shape_cast %125 : vector<1x16x128xf32> to vector<16x128xf32>
    %127 = vector.shape_cast %124 : vector<16x128xf32> to vector<1x16x128xf32>
    tpu.vector_store %arg3[%c7_90, %c0_91, %c0_92], %127 {strides = array<i32>} : memref<8x16x128xf32, #tpu.memory_space<vmem>>, vector<1x16x128xf32>,
    %cst_93 = arith.constant 0.000000e+00 : f32
    %128 = vector.broadcast %cst_93 : f32 to vector<16x128xf32>
    %129 = arith.select %122, %128, %120 : vector<16x128xi1>, vector<16x128xf32>
    %c0_94 = arith.constant 0 : index
    %c0_95 = arith.constant 0 : index
    %130 = vector.load %arg4[%c0_94, %c0_95] : memref<16x128xf32, #tpu.memory_space<vmem>>, vector<16x128xf32>
    tpu.vector_store %arg4[%c0_94, %c0_95], %129 {strides = array<i32>} : memref<16x128xf32, #tpu.memory_space<vmem>>, vector<16x128xf32>,
    return
  }
  func.func @transform_0(%arg0: i32, %arg1: i32) -> (i32, i32, i32) {
    %c0_i32 = arith.constant 0 : i32
    %c0_i32_0 = arith.constant 0 : i32
    return %arg1, %arg0, %c0_i32 : i32, i32, i32
  }
  func.func @transform_1(%arg0: i32, %arg1: i32) -> (i32, i32, i32) {
    %c0_i32 = arith.constant 0 : i32
    %c0_i32_0 = arith.constant 0 : i32
    return %arg1, %arg0, %c0_i32 : i32, i32, i32
  }
}

</mosaic_0001>

<llo_original>
// kernel: tpu_custom_call.1
$region0: #{tpu_custom_call.1}
  #allocation0 [shape = 'u32[]', space=smem, size = 0x4, offset = 0x4, fixed_abs, tag = 'smem constant byte address 0x4 - core index']
  #allocation1 [shape = 'u32[144,128]{1,0:T(1,128)}', space=vmem, size = 0x12000, scoped, tag = 'internal scratch']
  #allocation2 [shape = 'f32[16,128]{1,0:T(8,128)}', space=vmem, size = 0x2000, scoped, tag = 'scratch operand']
  %s0 = inlined_call_operand.hbm [shape: f32[8,16,128], index: 0, kind: input, shape index: {}]
  %s1 = inlined_call_operand.hbm [shape: f32[8,16,128], index: 1, kind: output, shape index: {}]
  %s2 = sld [smem:[#allocation0]]
  $region22: #{tpu_custom_call.1} parent=0
    _
  %s4 = ssub.s32 1, %s2
  %s5 = scalar_select 0, %s4, %s2
  $region1: #{tpu_custom_call.1} parent=0
    #allocation3 [shape = 'u8[65536]{0}', space=vmem, size = 0x10000, scoped, tag = 'input window, operand 0, single buffered']
    #allocation4 [shape = 's32[1]{0}', space=sflag, size = 0x4, scoped, tag = 'scoped memory for tpu_custom_call.1']
    #allocation5 [shape = 's32[1]{0}', space=sflag, size = 0x4, scoped, tag = 'scoped memory for tpu_custom_call.1']
    #allocation6 [shape = 'u8[65536]{0}', space=vmem, size = 0x10000, scoped, tag = 'output window, operand 0, single buffered']
    %6 = vsyncpa [#allocation4], 0
    %7 = vsyncpa [#allocation5], 0
    // Predicated region
    $region2: #{tpu_custom_call.1} parent=1 // pred_check
      _
    $region3: #{tpu_custom_call.1} parent=1 // pred_check_branch
      %9 = sbr.rel (0) target = $region5
    $region4: #{tpu_custom_call.1} parent=1 // pred_region
      %s11 = ssub.s32 2048, 2048
      %12 = vsyncadd [#allocation4], %s11
      %s13 = sshll.u32 [#allocation3], 4
      %s14 = int_to_ptr.vmem [resolvable:$true] %s13
      %19 = dma.hbm_to_vmem [thread:$0]  %s0, 2048, %s14, [#allocation4], 128, 128, 8
    $region5: #{tpu_custom_call.1} parent=1 // pred_fallthru
      _
    // Predicated region
    $region6: #{tpu_custom_call.1} parent=1 // pred_check
      _
    $region7: #{tpu_custom_call.1} parent=1 // pred_check_branch
      %21 = sbr.rel (0) target = $region9
    $region8: #{tpu_custom_call.1} parent=1 // pred_region
      %22 = dma.done [#allocation4], 2048
    $region9: #{tpu_custom_call.1} parent=1 // pred_fallthru
      _
    %p23 = scmp.eq.s32.totalorder 0, 0
    // Predicated region
    $region10: #{tpu_custom_call.1} parent=1 // pred_check
      %p24 = pneg %p23
    $region11: #{tpu_custom_call.1} parent=1 // pred_check_branch
      %26 = sbr.rel (%p24) target = $region13
    $region12: #{tpu_custom_call.1} parent=1 // pred_region
      %27 = vst [vmem:[#allocation2] sm:$0xff] 0.0
      %28 = vst [vmem:[#allocation2 + $0x8] sm:$0xff] 0.0
    $region13: #{tpu_custom_call.1} parent=1 // pred_fallthru
      _
    %v29 = vld [vmem:[#allocation2] sm:$0xff]
    %v30 = vld [vmem:[#allocation2 + $0x8] sm:$0xff]
    %v31 = vmul.f32 %v29, 0.5
    %v32 = vmul.f32 %v30, 0.5
    %v33 = vld [vmem:[#allocation3] sm:$0xff]
    %v34 = vld [vmem:[#allocation3 + $0x8] sm:$0xff]
    %v35 = vadd.f32 %v31, %v33
    %v36 = vadd.f32 %v32, %v34
    %vm37 = vcmp.gt.f32.partialorder %v35, 0.5
    %vm38 = vcmp.gt.f32.partialorder %v36, 0.5
    %v39 = vsel %vm37, 1, 0
    %v40 = vsel %vm38, 1, 0
    %v41 = vcvt.s32.f32 %v39
    %v42 = vcvt.s32.f32 %v40
    %43 = vst [vmem:[#allocation6] sm:$0xff] %v41
    %44 = vst [vmem:[#allocation6 + $0x8] sm:$0xff] %v42
    %v45 = vsel %vm37, 0.0, %v35
    %v46 = vsel %vm38, 0.0, %v36
    %47 = vst [vmem:[#allocation2] sm:$0xff] %v45
    %48 = vst [vmem:[#allocation2 + $0x8] sm:$0xff] %v46
    %v49 = vld [vmem:[#allocation2] sm:$0xff]
    %v50 = vld [vmem:[#allocation2 + $0x8] sm:$0xff]
    %v51 = vmul.f32 %v49, 0.5
    %v52 = vmul.f32 %v50, 0.5
    %s53 = scalar_lea.vmem [#allocation3], 16
    %v54 = vld [vmem:[%s53] sm:$0xff]
    %v55 = vld [vmem:[%s53 + $0x8] sm:$0xff]
    %v56 = vadd.f32 %v51, %v54
    %v57 = vadd.f32 %v52, %v55
    %vm58 = vcmp.gt.f32.partialorder %v56, 0.5
    %vm59 = vcmp.gt.f32.partialorder %v57, 0.5
    %v60 = vsel %vm58, 1, 0
    %v61 = vsel %vm59, 1, 0
    %v62 = vcvt.s32.f32 %v60
    %v63 = vcvt.s32.f32 %v61
    %s64 = scalar_lea.vmem [#allocation6], 16
    %65 = vst [vmem:[%s64] sm:$0xff] %v62
    %66 = vst [vmem:[%s64 + $0x8] sm:$0xff] %v63
    %v67 = vsel %vm58, 0.0, %v56
    %v68 = vsel %vm59, 0.0, %v57
    %69 = vst [vmem:[#allocation2] sm:$0xff] %v67
    %70 = vst [vmem:[#allocation2 + $0x8] sm:$0xff] %v68
    %v71 = vld [vmem:[#allocation2] sm:$0xff]
    %v72 = vld [vmem:[#allocation2 + $0x8] sm:$0xff]
    %v73 = vmul.f32 %v71, 0.5
    %v74 = vmul.f32 %v72, 0.5
    %s75 = scalar_lea.vmem [#allocation3], 32
    %v76 = vld [vmem:[%s75] sm:$0xff]
    %v77 = vld [vmem:[%s75 + $0x8] sm:$0xff]
    %v78 = vadd.f32 %v73, %v76
    %v79 = vadd.f32 %v74, %v77
    %vm80 = vcmp.gt.f32.partialorder %v78, 0.5
    %vm81 = vcmp.gt.f32.partialorder %v79, 0.5
    %v82 = vsel %vm80, 1, 0
    %v83 = vsel %vm81, 1, 0
    %v84 = vcvt.s32.f32 %v82
    %v85 = vcvt.s32.f32 %v83
    %s86 = scalar_lea.vmem [#allocation6], 32
    %87 = vst [vmem:[%s86] sm:$0xff] %v84
    %88 = vst [vmem:[%s86 + $0x8] sm:$0xff] %v85
    %v89 = vsel %vm80, 0.0, %v78
    %v90 = vsel %vm81, 0.0, %v79
    %91 = vst [vmem:[#allocation2] sm:$0xff] %v89
    %92 = vst [vmem:[#allocation2 + $0x8] sm:$0xff] %v90
    %v93 = vld [vmem:[#allocation2] sm:$0xff]
    %v94 = vld [vmem:[#allocation2 + $0x8] sm:$0xff]
    %v95 = vmul.f32 %v93, 0.5
    %v96 = vmul.f32 %v94, 0.5
    %s97 = scalar_lea.vmem [#allocation3], 48
    %v98 = vld [vmem:[%s97] sm:$0xff]
    %v99 = vld [vmem:[%s97 + $0x8] sm:$0xff]
    %v100 = vadd.f32 %v95, %v98
    %v101 = vadd.f32 %v96, %v99
    %vm102 = vcmp.gt.f32.partialorder %v100, 0.5
    %vm103 = vcmp.gt.f32.partialorder %v101, 0.5
    %v104 = vsel %vm102, 1, 0
    %v105 = vsel %vm103, 1, 0
    %v106 = vcvt.s32.f32 %v104
    %v107 = vcvt.s32.f32 %v105
    %s108 = scalar_lea.vmem [#allocation6], 48
    %109 = vst [vmem:[%s108] sm:$0xff] %v106
    %110 = vst [vmem:[%s108 + $0x8] sm:$0xff] %v107
    %v111 = vsel %vm102, 0.0, %v100
    %v112 = vsel %vm103, 0.0, %v101
    %113 = vst [vmem:[#allocation2] sm:$0xff] %v111
    %114 = vst [vmem:[#allocation2 + $0x8] sm:$0xff] %v112
    %v115 = vld [vmem:[#allocation2] sm:$0xff]
    %v116 = vld [vmem:[#allocation2 + $0x8] sm:$0xff]
    %v117 = vmul.f32 %v115, 0.5
    %v118 = vmul.f32 %v116, 0.5
    %s119 = scalar_lea.vmem [#allocation3], 64
    %v120 = vld [vmem:[%s119] sm:$0xff]
    %v121 = vld [vmem:[%s119 + $0x8] sm:$0xff]
    %v122 = vadd.f32 %v117, %v120
    %v123 = vadd.f32 %v118, %v121
    %vm124 = vcmp.gt.f32.partialorder %v122, 0.5
    %vm125 = vcmp.gt.f32.partialorder %v123, 0.5
    %v126 = vsel %vm124, 1, 0
    %v127 = vsel %vm125, 1, 0
    %v128 = vcvt.s32.f32 %v126
    %v129 = vcvt.s32.f32 %v127
    %s130 = scalar_lea.vmem [#allocation6], 64
    %131 = vst [vmem:[%s130] sm:$0xff] %v128
    %132 = vst [vmem:[%s130 + $0x8] sm:$0xff] %v129
    %v133 = vsel %vm124, 0.0, %v122
    %v134 = vsel %vm125, 0.0, %v123
    %135 = vst [vmem:[#allocation2] sm:$0xff] %v133
    %136 = vst [vmem:[#allocation2 + $0x8] sm:$0xff] %v134
    %v137 = vld [vmem:[#allocation2] sm:$0xff]
    %v138 = vld [vmem:[#allocation2 + $0x8] sm:$0xff]
    %v139 = vmul.f32 %v137, 0.5
    %v140 = vmul.f32 %v138, 0.5
    %s141 = scalar_lea.vmem [#allocation3], 80
    %v142 = vld [vmem:[%s141] sm:$0xff]
    %v143 = vld [vmem:[%s141 + $0x8] sm:$0xff]
    %v144 = vadd.f32 %v139, %v142
    %v145 = vadd.f32 %v140, %v143
    %vm146 = vcmp.gt.f32.partialorder %v144, 0.5
    %vm147 = vcmp.gt.f32.partialorder %v145, 0.5
    %v148 = vsel %vm146, 1, 0
    %v149 = vsel %vm147, 1, 0
    %v150 = vcvt.s32.f32 %v148
    %v151 = vcvt.s32.f32 %v149
    %s152 = scalar_lea.vmem [#allocation6], 80
    %153 = vst [vmem:[%s152] sm:$0xff] %v150
    %154 = vst [vmem:[%s152 + $0x8] sm:$0xff] %v151
    %v155 = vsel %vm146, 0.0, %v144
    %v156 = vsel %vm147, 0.0, %v145
    %157 = vst [vmem:[#allocation2] sm:$0xff] %v155
    %158 = vst [vmem:[#allocation2 + $0x8] sm:$0xff] %v156
    %v159 = vld [vmem:[#allocation2] sm:$0xff]
    %v160 = vld [vmem:[#allocation2 + $0x8] sm:$0xff]
    %v161 = vmul.f32 %v159, 0.5
    %v162 = vmul.f32 %v160, 0.5
    %s163 = scalar_lea.vmem [#allocation3], 96
    %v164 = vld [vmem:[%s163] sm:$0xff]
    %v165 = vld [vmem:[%s163 + $0x8] sm:$0xff]
    %v166 = vadd.f32 %v161, %v164
    %v167 = vadd.f32 %v162, %v165
    %vm168 = vcmp.gt.f32.partialorder %v166, 0.5
    %vm169 = vcmp.gt.f32.partialorder %v167, 0.5
    %v170 = vsel %vm168, 1, 0
    %v171 = vsel %vm169, 1, 0
    %v172 = vcvt.s32.f32 %v170
    %v173 = vcvt.s32.f32 %v171
    %s174 = scalar_lea.vmem [#allocation6], 96
    %175 = vst [vmem:[%s174] sm:$0xff] %v172
    %176 = vst [vmem:[%s174 + $0x8] sm:$0xff] %v173
    %v177 = vsel %vm168, 0.0, %v166
    %v178 = vsel %vm169, 0.0, %v167
    %179 = vst [vmem:[#allocation2] sm:$0xff] %v177
    %180 = vst [vmem:[#allocation2 + $0x8] sm:$0xff] %v178
    %v181 = vld [vmem:[#allocation2] sm:$0xff]
    %v182 = vld [vmem:[#allocation2 + $0x8] sm:$0xff]
    %v183 = vmul.f32 %v181, 0.5
    %v184 = vmul.f32 %v182, 0.5
    %s185 = scalar_lea.vmem [#allocation3], 112
    %v186 = vld [vmem:[%s185] sm:$0xff]
    %v187 = vld [vmem:[%s185 + $0x8] sm:$0xff]
    %v188 = vadd.f32 %v183, %v186
    %v189 = vadd.f32 %v184, %v187
    %vm190 = vcmp.gt.f32.partialorder %v188, 0.5
    %vm191 = vcmp.gt.f32.partialorder %v189, 0.5
    %v192 = vsel %vm190, 1, 0
    %v193 = vsel %vm191, 1, 0
    %v194 = vcvt.s32.f32 %v192
    %v195 = vcvt.s32.f32 %v193
    %s196 = scalar_lea.vmem [#allocation6], 112
    %197 = vst [vmem:[%s196] sm:$0xff] %v194
    %198 = vst [vmem:[%s196 + $0x8] sm:$0xff] %v195
    %v199 = vsel %vm190, 0.0, %v188
    %v200 = vsel %vm191, 0.0, %v189
    %201 = vst [vmem:[#allocation2] sm:$0xff] %v199
    %202 = vst [vmem:[#allocation2 + $0x8] sm:$0xff] %v200
    // Predicated region
    $region14: #{tpu_custom_call.1} parent=1 // pred_check
      _
    $region15: #{tpu_custom_call.1} parent=1 // pred_check_branch
      %204 = sbr.rel (0) target = $region17
    $region16: #{tpu_custom_call.1} parent=1 // pred_region
      %s206 = ssub.s32 2048, 2048
      %207 = vsyncadd [#allocation5], %s206
      %s208 = sshll.u32 [#allocation6], 4
      %s209 = int_to_ptr.vmem [resolvable:$true] %s208
      %214 = dma.vmem_to_hbm [thread:$0]  %s209, 2048, %s1, [#allocation5], 128, 128, 8
    $region17: #{tpu_custom_call.1} parent=1 // pred_fallthru
      _
    // Predicated region
    $region18: #{tpu_custom_call.1} parent=1 // pred_check
      _
    $region19: #{tpu_custom_call.1} parent=1 // pred_check_branch
      %216 = sbr.rel (0) target = $region21
    $region20: #{tpu_custom_call.1} parent=1 // pred_region
      %217 = dma.done [#allocation5], 2048
    $region21: #{tpu_custom_call.1} parent=1 // pred_fallthru
      _
    %218 = vsyncpa [#allocation4], 1
    %219 = vsyncpa [#allocation5], 1

</llo_original>
